<compile_context>
chip_gen: v7x
topology: tpu7x:2x2x1
jax: 0.10.0
libtpu: 0.0.40
codegen_flags: <defaults>
</compile_context>

<pallas_src>
import jax
import jax.numpy as jnp
from jax import lax
from jax.experimental import pallas as pl
from jax.experimental.pallas import tpu as pltpu


# ----------------------------------------------------------------------------
# Kernels
# ----------------------------------------------------------------------------
def _vmem_gather_kernel(ids_ref, tok_ref, pos_ref, out_ref):
    """Small-vocab fast path: token table resident in VMEM.

    ids_ref : SMEM (B*T,) int32  scalar-prefetched flat token ids
    tok_ref : VMEM (V, E)        full token table (constant index_map)
    pos_ref : VMEM (T, E)        rows 0..T-1 of the position table
    out_ref : VMEM (1, T, E)     output tile for this batch row
    """
    b = pl.program_id(0)
    T = pos_ref.shape[0]
    # Static loop over tokens (fast path is gated to small T): every *store*
    # lands at a static, aligned row offset; only the gather *load* offset is
    # dynamic (pl.ds with a traced start read from SMEM).
    for t in range(T):
        row = ids_ref[b * T + t]
        tok_row = tok_ref[pl.ds(row, 1), :].astype(jnp.float32)
        pos_row = pos_ref[t:t + 1, :].astype(jnp.float32)
        out_ref[0, t:t + 1, :] = (tok_row + pos_row).astype(out_ref.dtype)


def _hbm_gather_kernel(ids_ref, tok_hbm, pos_ref, out_ref, gbuf, sem):
    """Large-vocab path: per-row HBM DMA gather, double-buffered across steps.

    ids_ref : SMEM (B*T,) int32   scalar-prefetched flat token ids
    tok_hbm : HBM  (V, E)         full token table (never copied to VMEM)
    pos_ref : VMEM (T, TE)        position rows for this E chunk
    out_ref : VMEM (1, T, TE)     output tile for (batch row, E chunk)
    gbuf    : VMEM (2, T, TE)     2-slot gather scratch (double buffer)
    sem     : DMA semaphores (2,) one per slot
    """
    b = pl.program_id(0)
    e = pl.program_id(1)
    n_b = pl.num_programs(0)
    n_e = pl.num_programs(1)
    _, T, TE = gbuf.shape

    s = b * n_e + e          # linearized grid step (row-major, e fastest)
    slot = s % 2             # slot whose gathers were issued for *this* step
    unroll = min(T, 8)

    def issue(row_b, chunk_e, to_slot):
        # Issue T row gathers (HBM -> gbuf[to_slot]); all signal sem[to_slot].
        col0 = chunk_e * TE

        def body(t, carry):
            tok_id = ids_ref[row_b * T + t]            # SMEM scalar read
            pltpu.make_async_copy(
                tok_hbm.at[pl.ds(tok_id, 1), pl.ds(col0, TE)],
                gbuf.at[to_slot, pl.ds(t, 1), :],
                sem.at[to_slot],
            ).start()
            return carry

        lax.fori_loop(0, T, body, 0, unroll=unroll)

    # Prime the pipeline: the very first grid step issues its own gathers.
    @pl.when(s == 0)
    def _():
        issue(0, 0, 0)

    # Prefetch the NEXT grid step's rows into the other slot; these DMAs
    # overlap with this step's waits, the VPU add and the output writeback.
    @pl.when(s + 1 < n_b * n_e)
    def _():
        next_b = jnp.where(e + 1 < n_e, b, b + 1)
        next_e = jnp.where(e + 1 < n_e, e + 1, 0)
        issue(next_b, next_e, 1 - slot)

    # Wait for this step's T row gathers.  Only the copy shape and the
    # semaphore matter for a wait, so matching descriptors are reconstructed.
    def wait_body(t, carry):
        pltpu.make_async_copy(
            tok_hbm.at[pl.ds(0, 1), pl.ds(0, TE)],
            gbuf.at[slot, pl.ds(t, 1), :],
            sem.at[slot],
        ).wait()
        return carry

    lax.fori_loop(0, T, wait_body, 0, unroll=unroll)

    # Fused position add (f32 accumulate); lane-dense (T, TE) store.
    acc = gbuf[slot].astype(jnp.float32) + pos_ref[...].astype(jnp.float32)
    out_ref[0] = acc.astype(out_ref.dtype)


# ----------------------------------------------------------------------------
# Helpers
# ----------------------------------------------------------------------------
def _vmem_limit_bytes():
    """Generation-aware VMEM limit (v5e/v6e: 128 MiB physical, v7x: 64 MiB)."""
    try:
        cap = int(pltpu.get_tpu_info().vmem_capacity_bytes)
    except Exception:
        cap = 64 * 1024 * 1024
    return max(32 * 1024 * 1024, min((cap * 3) // 4, 100 * 1024 * 1024))


def _pick_e_tile(T, E, itemsize, budget_bytes):
    """Largest lane tile TE (multiple of 128 dividing E) whose per-step working
    set (double-buffered out + pos tiles + 2-slot gather scratch ~= 6 tiles of
    (T, TE)) fits the budget."""
    candidates = sorted(
        {E // k for k in range(1, E // 128 + 1)
         if E % k == 0 and (E // k) % 128 == 0},
        reverse=True)
    if not candidates:
        return E
    for te in candidates:
        if 6 * T * te * itemsize <= budget_bytes:
            return te
    return candidates[-1]


# ----------------------------------------------------------------------------
# Wrapper
# ----------------------------------------------------------------------------
def input_embeddings(ids, tok_table, pos_table, *, force_hbm_gather=False,
                     max_e_tile=None):
    """ids: [B, T] int; tok_table: [V, E]; pos_table: [block_size, E] -> [B, T, E]."""
    B, T = ids.shape
    V, E = tok_table.shape
    assert T <= pos_table.shape[0], "sequence longer than block_size"

    itemsize = jnp.dtype(tok_table.dtype).itemsize
    sublane = {4: 8, 2: 16, 1: 32}.get(itemsize, 8)
    assert T % sublane == 0, (
        f"T must be a multiple of {sublane} for dtype {tok_table.dtype}")
    assert E % 128 == 0, "E must be a multiple of 128 (lane width)"
    # Scalar-prefetched ids live in SMEM (1-D SMEM pads to next_pow2(4N) bytes);
    # cross-step prefetch needs the *next* row's ids, so they stay prefetched.
    assert B * T <= 32768, "flat id array too large for SMEM scalar prefetch"

    # TODO(synk): PyTorch nn.Embedding raises IndexError on out-of-range ids;
    # here they are clamped so an invalid id can never drive a DMA off-table.
    ids_flat = jnp.clip(ids.reshape(B * T).astype(jnp.int32), 0, V - 1)
    pos = pos_table[:T].astype(tok_table.dtype)

    vmem_limit = _vmem_limit_bytes()
    table_bytes = V * E * itemsize
    use_vmem_table = (not force_hbm_gather
                      and table_bytes <= 4 * 1024 * 1024
                      and T <= 256)

    if use_vmem_table:
        # Small-vocab fast path: table fetched once into VMEM, rows gathered
        # with dynamic slices, no per-row DMA descriptors.  (The constant-index
        # tok/pos blocks are still double-buffered by the pipeline; single
        # buffering them via pipeline_mode is a further VMEM saving left out
        # for portability.)
        return pl.pallas_call(
            _vmem_gather_kernel,
            out_shape=jax.ShapeDtypeStruct((B, T, E), tok_table.dtype),
            grid_spec=pltpu.PrefetchScalarGridSpec(
                num_scalar_prefetch=1,                  # ids_flat -> SMEM
                grid=(B,),
                in_specs=[
                    pl.BlockSpec((V, E), lambda b, ids_ref: (0, 0)),
                    pl.BlockSpec((T, E), lambda b, ids_ref: (0, 0)),
                ],
                out_specs=pl.BlockSpec((1, T, E), lambda b, ids_ref: (b, 0, 0)),
            ),
            compiler_params=pltpu.CompilerParams(
                dimension_semantics=("parallel",),      # no cross-step state
                vmem_limit_bytes=vmem_limit,
            ),
        )(ids_flat, tok_table, pos)

    # Large-vocab path: HBM row gather, double-buffered across grid steps,
    # E chunked so the per-step working set fits v7x's 64 MiB VMEM.
    te = _pick_e_tile(T, E, itemsize, vmem_limit // 3)
    if max_e_tile is not None:
        te = min(te, int(max_e_tile))
    assert te % 128 == 0 and E % te == 0
    n_e = E // te

    return pl.pallas_call(
        _hbm_gather_kernel,
        out_shape=jax.ShapeDtypeStruct((B, T, E), tok_table.dtype),
        grid_spec=pltpu.PrefetchScalarGridSpec(
            num_scalar_prefetch=1,                      # ids_flat -> SMEM
            grid=(B, n_e),
            in_specs=[
                pl.BlockSpec(memory_space=pl.ANY),      # table stays in HBM
                pl.BlockSpec((T, te), lambda b, e, ids_ref: (0, e)),
            ],
            out_specs=pl.BlockSpec((1, T, te), lambda b, e, ids_ref: (b, 0, e)),
            scratch_shapes=[
                pltpu.VMEM((2, T, te), tok_table.dtype),  # 2-slot gather buf
                pltpu.SemaphoreType.DMA((2,)),            # one sem per slot
            ],
        ),
        # The cross-step prefetch carries scratch state between consecutive
        # grid steps, so both axes must be "arbitrary": a megacore "parallel"
        # split would leave the second core's first step unprimed.
        compiler_params=pltpu.CompilerParams(
            dimension_semantics=("arbitrary", "arbitrary"),
            vmem_limit_bytes=vmem_limit,
        ),
    )(ids_flat, tok_table, pos)


# ----------------------------------------------------------------------------
# Demo / self-test
# ----------------------------------------------------------------------------
if __name__ == "__main__":
    vocab_size, block_size, emb_dim = 256, 16, 256
    B, T = 2, 8

    key = jax.random.PRNGKey(0)
    k_tok, k_pos, k_ids = jax.random.split(key, 3)

    tok_table = jax.random.normal(k_tok, (vocab_size, emb_dim), dtype=jnp.float32)
    pos_table = jax.random.normal(k_pos, (block_size, emb_dim), dtype=jnp.float32)
    ids = jax.random.randint(k_ids, (B, T), 0, vocab_size, dtype=jnp.int32)

    # Pure-JAX reference of the PyTorch forward.
    ref = tok_table[ids] + pos_table[:T][None, :, :]

    # 1) Small-vocab fast path (VMEM-resident table).
    out_fast = jax.block_until_ready(input_embeddings(ids, tok_table, pos_table))
    assert out_fast.shape == (B, T, emb_dim) and out_fast.dtype == jnp.float32
    assert jnp.allclose(out_fast, ref, atol=1e-6), "fast path mismatch"

    # 2) Large-vocab path, forced on the same inputs with a 128-lane E tile so
    #    the cross-step double-buffered / E-chunked gather logic is exercised.
    out_hbm = jax.block_until_ready(
        input_embeddings(ids, tok_table, pos_table,
                         force_hbm_gather=True, max_e_tile=128))
    assert out_hbm.shape == (B, T, emb_dim) and out_hbm.dtype == jnp.float32
    assert jnp.allclose(out_hbm, ref, atol=1e-6), "HBM gather path mismatch"

    print("KERNEL_OK")
</pallas_src>

<mosaic_0001>
module attributes {stable_mosaic.version = 11 : i64} {
  func.func @_vmem_gather_kernel(%arg0: i32, %arg1: memref<16xi32, #tpu.memory_space<smem>>, %arg2: memref<256x256xf32, #tpu.memory_space<vmem>>, %arg3: memref<8x256xf32, #tpu.memory_space<vmem>>, %arg4: memref<1x8x256xf32, #tpu.memory_space<vmem>>) attributes {dimension_semantics = [#tpu.dimension_semantics<parallel>], iteration_bounds = array<i64: 2>, scalar_prefetch = 1 : i64, scratch_operands = 0 : i64, tpu.core_type = #tpu.core_type<tc>, window_params = [{pipeline_mode = #tpu.pipeline_mode<synchronous>, transform_indices = @transform_0, window_bounds = array<i64: 256, 256>}, {pipeline_mode = #tpu.pipeline_mode<synchronous>, transform_indices = @transform_1, window_bounds = array<i64: 8, 256>}, {transform_indices = @transform_2, window_bounds = array<i64: 1, 8, 256>}]} {
    %c8_i32 = arith.constant 8 : i32
    %0 = arith.muli %arg0, %c8_i32 : i32
    %c0_i32 = arith.constant 0 : i32
    %1 = arith.addi %0, %c0_i32 : i32
    %2 = arith.index_cast %1 : i32 to index
    %3 = memref.load %arg1[%2] : memref<16xi32, #tpu.memory_space<smem>>
    %4 = arith.index_cast %3 : i32 to index
    %c0 = arith.constant 0 : index
    %5 = vector.load %arg2[%4, %c0] : memref<256x256xf32, #tpu.memory_space<vmem>>, vector<1x256xf32>
    %c0_0 = arith.constant 0 : index
    %c0_1 = arith.constant 0 : index
    %6 = vector.load %arg3[%c0_0, %c0_1] : memref<8x256xf32, #tpu.memory_space<vmem>>, vector<1x256xf32>
    %7 = arith.addf %5, %6 : vector<1x256xf32>
    %c0_2 = arith.constant 0 : index
    %c0_3 = arith.constant 0 : index
    %c0_4 = arith.constant 0 : index
    %8 = vector.load %arg4[%c0_2, %c0_3, %c0_4] : memref<1x8x256xf32, #tpu.memory_space<vmem>>, vector<1x1x256xf32>
    %9 = vector.shape_cast %8 : vector<1x1x256xf32> to vector<1x256xf32>
    %10 = vector.shape_cast %7 : vector<1x256xf32> to vector<1x1x256xf32>
    tpu.vector_store %arg4[%c0_2, %c0_3, %c0_4], %10 {strides = array<i32>} : memref<1x8x256xf32, #tpu.memory_space<vmem>>, vector<1x1x256xf32>,
    %c8_i32_5 = arith.constant 8 : i32
    %11 = arith.muli %arg0, %c8_i32_5 : i32
    %c1_i32 = arith.constant 1 : i32
    %12 = arith.addi %11, %c1_i32 : i32
    %13 = arith.index_cast %12 : i32 to index
    %14 = memref.load %arg1[%13] : memref<16xi32, #tpu.memory_space<smem>>
    %15 = arith.index_cast %14 : i32 to index
    %c0_6 = arith.constant 0 : index
    %16 = vector.load %arg2[%15, %c0_6] : memref<256x256xf32, #tpu.memory_space<vmem>>, vector<1x256xf32>
    %c1 = arith.constant 1 : index
    %c0_7 = arith.constant 0 : index
    %17 = vector.load %arg3[%c1, %c0_7] : memref<8x256xf32, #tpu.memory_space<vmem>>, vector<1x256xf32>
    %18 = arith.addf %16, %17 : vector<1x256xf32>
    %c0_8 = arith.constant 0 : index
    %c1_9 = arith.constant 1 : index
    %c0_10 = arith.constant 0 : index
    %19 = vector.load %arg4[%c0_8, %c1_9, %c0_10] : memref<1x8x256xf32, #tpu.memory_space<vmem>>, vector<1x1x256xf32>
    %20 = vector.shape_cast %19 : vector<1x1x256xf32> to vector<1x256xf32>
    %21 = vector.shape_cast %18 : vector<1x256xf32> to vector<1x1x256xf32>
    tpu.vector_store %arg4[%c0_8, %c1_9, %c0_10], %21 {strides = array<i32>} : memref<1x8x256xf32, #tpu.memory_space<vmem>>, vector<1x1x256xf32>,
    %c8_i32_11 = arith.constant 8 : i32
    %22 = arith.muli %arg0, %c8_i32_11 : i32
    %c2_i32 = arith.constant 2 : i32
    %23 = arith.addi %22, %c2_i32 : i32
    %24 = arith.index_cast %23 : i32 to index
    %25 = memref.load %arg1[%24] : memref<16xi32, #tpu.memory_space<smem>>
    %26 = arith.index_cast %25 : i32 to index
    %c0_12 = arith.constant 0 : index
    %27 = vector.load %arg2[%26, %c0_12] : memref<256x256xf32, #tpu.memory_space<vmem>>, vector<1x256xf32>
    %c2 = arith.constant 2 : index
    %c0_13 = arith.constant 0 : index
    %28 = vector.load %arg3[%c2, %c0_13] : memref<8x256xf32, #tpu.memory_space<vmem>>, vector<1x256xf32>
    %29 = arith.addf %27, %28 : vector<1x256xf32>
    %c0_14 = arith.constant 0 : index
    %c2_15 = arith.constant 2 : index
    %c0_16 = arith.constant 0 : index
    %30 = vector.load %arg4[%c0_14, %c2_15, %c0_16] : memref<1x8x256xf32, #tpu.memory_space<vmem>>, vector<1x1x256xf32>
    %31 = vector.shape_cast %30 : vector<1x1x256xf32> to vector<1x256xf32>
    %32 = vector.shape_cast %29 : vector<1x256xf32> to vector<1x1x256xf32>
    tpu.vector_store %arg4[%c0_14, %c2_15, %c0_16], %32 {strides = array<i32>} : memref<1x8x256xf32, #tpu.memory_space<vmem>>, vector<1x1x256xf32>,
    %c8_i32_17 = arith.constant 8 : i32
    %33 = arith.muli %arg0, %c8_i32_17 : i32
    %c3_i32 = arith.constant 3 : i32
    %34 = arith.addi %33, %c3_i32 : i32
    %35 = arith.index_cast %34 : i32 to index
    %36 = memref.load %arg1[%35] : memref<16xi32, #tpu.memory_space<smem>>
    %37 = arith.index_cast %36 : i32 to index
    %c0_18 = arith.constant 0 : index
    %38 = vector.load %arg2[%37, %c0_18] : memref<256x256xf32, #tpu.memory_space<vmem>>, vector<1x256xf32>
    %c3 = arith.constant 3 : index
    %c0_19 = arith.constant 0 : index
    %39 = vector.load %arg3[%c3, %c0_19] : memref<8x256xf32, #tpu.memory_space<vmem>>, vector<1x256xf32>
    %40 = arith.addf %38, %39 : vector<1x256xf32>
    %c0_20 = arith.constant 0 : index
    %c3_21 = arith.constant 3 : index
    %c0_22 = arith.constant 0 : index
    %41 = vector.load %arg4[%c0_20, %c3_21, %c0_22] : memref<1x8x256xf32, #tpu.memory_space<vmem>>, vector<1x1x256xf32>
    %42 = vector.shape_cast %41 : vector<1x1x256xf32> to vector<1x256xf32>
    %43 = vector.shape_cast %40 : vector<1x256xf32> to vector<1x1x256xf32>
    tpu.vector_store %arg4[%c0_20, %c3_21, %c0_22], %43 {strides = array<i32>} : memref<1x8x256xf32, #tpu.memory_space<vmem>>, vector<1x1x256xf32>,
    %c8_i32_23 = arith.constant 8 : i32
    %44 = arith.muli %arg0, %c8_i32_23 : i32
    %c4_i32 = arith.constant 4 : i32
    %45 = arith.addi %44, %c4_i32 : i32
    %46 = arith.index_cast %45 : i32 to index
    %47 = memref.load %arg1[%46] : memref<16xi32, #tpu.memory_space<smem>>
    %48 = arith.index_cast %47 : i32 to index
    %c0_24 = arith.constant 0 : index
    %49 = vector.load %arg2[%48, %c0_24] : memref<256x256xf32, #tpu.memory_space<vmem>>, vector<1x256xf32>
    %c4 = arith.constant 4 : index
    %c0_25 = arith.constant 0 : index
    %50 = vector.load %arg3[%c4, %c0_25] : memref<8x256xf32, #tpu.memory_space<vmem>>, vector<1x256xf32>
    %51 = arith.addf %49, %50 : vector<1x256xf32>
    %c0_26 = arith.constant 0 : index
    %c4_27 = arith.constant 4 : index
    %c0_28 = arith.constant 0 : index
    %52 = vector.load %arg4[%c0_26, %c4_27, %c0_28] : memref<1x8x256xf32, #tpu.memory_space<vmem>>, vector<1x1x256xf32>
    %53 = vector.shape_cast %52 : vector<1x1x256xf32> to vector<1x256xf32>
    %54 = vector.shape_cast %51 : vector<1x256xf32> to vector<1x1x256xf32>
    tpu.vector_store %arg4[%c0_26, %c4_27, %c0_28], %54 {strides = array<i32>} : memref<1x8x256xf32, #tpu.memory_space<vmem>>, vector<1x1x256xf32>,
    %c8_i32_29 = arith.constant 8 : i32
    %55 = arith.muli %arg0, %c8_i32_29 : i32
    %c5_i32 = arith.constant 5 : i32
    %56 = arith.addi %55, %c5_i32 : i32
    %57 = arith.index_cast %56 : i32 to index
    %58 = memref.load %arg1[%57] : memref<16xi32, #tpu.memory_space<smem>>
    %59 = arith.index_cast %58 : i32 to index
    %c0_30 = arith.constant 0 : index
    %60 = vector.load %arg2[%59, %c0_30] : memref<256x256xf32, #tpu.memory_space<vmem>>, vector<1x256xf32>
    %c5 = arith.constant 5 : index
    %c0_31 = arith.constant 0 : index
    %61 = vector.load %arg3[%c5, %c0_31] : memref<8x256xf32, #tpu.memory_space<vmem>>, vector<1x256xf32>
    %62 = arith.addf %60, %61 : vector<1x256xf32>
    %c0_32 = arith.constant 0 : index
    %c5_33 = arith.constant 5 : index
    %c0_34 = arith.constant 0 : index
    %63 = vector.load %arg4[%c0_32, %c5_33, %c0_34] : memref<1x8x256xf32, #tpu.memory_space<vmem>>, vector<1x1x256xf32>
    %64 = vector.shape_cast %63 : vector<1x1x256xf32> to vector<1x256xf32>
    %65 = vector.shape_cast %62 : vector<1x256xf32> to vector<1x1x256xf32>
    tpu.vector_store %arg4[%c0_32, %c5_33, %c0_34], %65 {strides = array<i32>} : memref<1x8x256xf32, #tpu.memory_space<vmem>>, vector<1x1x256xf32>,
    %c8_i32_35 = arith.constant 8 : i32
    %66 = arith.muli %arg0, %c8_i32_35 : i32
    %c6_i32 = arith.constant 6 : i32
    %67 = arith.addi %66, %c6_i32 : i32
    %68 = arith.index_cast %67 : i32 to index
    %69 = memref.load %arg1[%68] : memref<16xi32, #tpu.memory_space<smem>>
    %70 = arith.index_cast %69 : i32 to index
    %c0_36 = arith.constant 0 : index
    %71 = vector.load %arg2[%70, %c0_36] : memref<256x256xf32, #tpu.memory_space<vmem>>, vector<1x256xf32>
    %c6 = arith.constant 6 : index
    %c0_37 = arith.constant 0 : index
    %72 = vector.load %arg3[%c6, %c0_37] : memref<8x256xf32, #tpu.memory_space<vmem>>, vector<1x256xf32>
    %73 = arith.addf %71, %72 : vector<1x256xf32>
    %c0_38 = arith.constant 0 : index
    %c6_39 = arith.constant 6 : index
    %c0_40 = arith.constant 0 : index
    %74 = vector.load %arg4[%c0_38, %c6_39, %c0_40] : memref<1x8x256xf32, #tpu.memory_space<vmem>>, vector<1x1x256xf32>
    %75 = vector.shape_cast %74 : vector<1x1x256xf32> to vector<1x256xf32>
    %76 = vector.shape_cast %73 : vector<1x256xf32> to vector<1x1x256xf32>
    tpu.vector_store %arg4[%c0_38, %c6_39, %c0_40], %76 {strides = array<i32>} : memref<1x8x256xf32, #tpu.memory_space<vmem>>, vector<1x1x256xf32>,
    %c8_i32_41 = arith.constant 8 : i32
    %77 = arith.muli %arg0, %c8_i32_41 : i32
    %c7_i32 = arith.constant 7 : i32
    %78 = arith.addi %77, %c7_i32 : i32
    %79 = arith.index_cast %78 : i32 to index
    %80 = memref.load %arg1[%79] : memref<16xi32, #tpu.memory_space<smem>>
    %81 = arith.index_cast %80 : i32 to index
    %c0_42 = arith.constant 0 : index
    %82 = vector.load %arg2[%81, %c0_42] : memref<256x256xf32, #tpu.memory_space<vmem>>, vector<1x256xf32>
    %c7 = arith.constant 7 : index
    %c0_43 = arith.constant 0 : index
    %83 = vector.load %arg3[%c7, %c0_43] : memref<8x256xf32, #tpu.memory_space<vmem>>, vector<1x256xf32>
    %84 = arith.addf %82, %83 : vector<1x256xf32>
    %c0_44 = arith.constant 0 : index
    %c7_45 = arith.constant 7 : index
    %c0_46 = arith.constant 0 : index
    %85 = vector.load %arg4[%c0_44, %c7_45, %c0_46] : memref<1x8x256xf32, #tpu.memory_space<vmem>>, vector<1x1x256xf32>
    %86 = vector.shape_cast %85 : vector<1x1x256xf32> to vector<1x256xf32>
    %87 = vector.shape_cast %84 : vector<1x256xf32> to vector<1x1x256xf32>
    tpu.vector_store %arg4[%c0_44, %c7_45, %c0_46], %87 {strides = array<i32>} : memref<1x8x256xf32, #tpu.memory_space<vmem>>, vector<1x1x256xf32>,
    return
  }
  func.func @transform_0(%arg0: i32, %arg1: memref<16xi32, #tpu.memory_space<smem>>) -> (i32, i32) {
    %c0_i32 = arith.constant 0 : i32
    %c0_i32_0 = arith.constant 0 : i32
    %c0_i32_1 = arith.constant 0 : i32
    return %c0_i32, %c0_i32_0 : i32, i32
  }
  func.func @transform_1(%arg0: i32, %arg1: memref<16xi32, #tpu.memory_space<smem>>) -> (i32, i32) {
    %c0_i32 = arith.constant 0 : i32
    %c0_i32_0 = arith.constant 0 : i32
    %c0_i32_1 = arith.constant 0 : i32
    return %c0_i32, %c0_i32_0 : i32, i32
  }
  func.func @transform_2(%arg0: i32, %arg1: memref<16xi32, #tpu.memory_space<smem>>) -> (i32, i32, i32) {
    %c0_i32 = arith.constant 0 : i32
    %c0_i32_0 = arith.constant 0 : i32
    %c0_i32_1 = arith.constant 0 : i32
    return %arg0, %c0_i32, %c0_i32_0 : i32, i32, i32
  }
}

</mosaic_0001>

<llo_original>
// kernel: tpu_custom_call.1
$region0: #{tpu_custom_call.1}
  #allocation0 [shape = 'u32[]', space=smem, size = 0x4, offset = 0x4, fixed_abs, tag = 'smem constant byte address 0x4 - core index']
  #allocation1 [shape = 'u32[144,128]{1,0:T(1,128)}', space=vmem, size = 0x12000, scoped, tag = 'internal scratch']
  #allocation2 [shape = 's32[1]{0}', space=sflag, size = 0x4, scoped, tag = 'scoped memory for tpu_custom_call.1']
  #allocation3 [shape = 'u8[512]{0}', space=smem, size = 0x200, scoped, tag = 'prefetched SMEM operand 0']
  %s0 = inlined_call_operand.hbm [shape: s32[16], index: 0, kind: input, shape index: {}]
  %s1 = inlined_call_operand.hbm [shape: f32[256,256], index: 1, kind: input, shape index: {}]
  %s2 = inlined_call_operand.hbm [shape: f32[8,256], index: 2, kind: input, shape index: {}]
  %s3 = inlined_call_operand.hbm [shape: f32[2,8,256], index: 3, kind: output, shape index: {}]
  %s4 = sld [smem:[#allocation0]]
  $region49: #{tpu_custom_call.1} parent=0
    _
  %s6 = ssub.s32 1, %s4
  %s7 = scalar_select 0, %s6, %s4
  %9 = dma.hbm_to_smem %s0, 16, [#allocation3], [#allocation2]
  %10 = dma.done [#allocation2], 16
  %11 = sfence
  $region1: #{tpu_custom_call.1} parent=0
    #allocation4 [shape = 'u8[262144]{0}', space=vmem, size = 0x40000, scoped, tag = 'input window, operand 1, single buffered']
    #allocation5 [shape = 's32[2]{0}', space=sflag, size = 0x8, scoped, tag = 'scoped memory for tpu_custom_call.1']
    #allocation6 [shape = 's32[2]{0}', space=sflag, size = 0x8, scoped, tag = 'scoped memory for tpu_custom_call.1']
    #allocation7 [shape = 'u8[8192]{0}', space=vmem, size = 0x2000, scoped, tag = 'input window, operand 2, single buffered']
    #allocation8 [shape = 's32[1]{0}', space=sflag, size = 0x4, scoped, tag = 'scoped memory for tpu_custom_call.1']
    #allocation9 [shape = 'u8[16384]{0}', space=vmem, size = 0x4000, scoped, tag = 'output window, operand 0']
    %12 = vsyncpa [#allocation5], 0
    %13 = vsyncpa [#allocation8], 0
    %14 = vsyncpa [#allocation6], 0
    %s15 = scalar_lea.sflag [#allocation6], 1
    %16 = vsyncpa %s15, 0
    loop: start=0, step=1, limit=4
    $region2: #{tpu_custom_call.1} parent=1 // loop_pre_header
      _
    $region3: #{tpu_custom_call.1} parent=1 // loop_header
      %s18 = sphi 0, %s22
      %p19 = scmp.ge.s32.totalorder %s18, 4
      %s26 = sphi 0, %s26
      %s28 = sphi 0, %s26
      %s29 = sphi 0, %s28
      %s43 = sphi 0, %s29
      %s47 = sphi 0, %s47
      %s49 = sphi 0, %s47
      %s50 = sphi 0, %s49
      %s64 = sphi 0, %s50
      %s70 = sphi 0, %s72
      %s73 = sphi 0, %s70
      %s74 = sphi 0, %s73
      %s90 = sphi 0, %s74
    $region4: #{tpu_custom_call.1} parent=1 // loop_header_branch
      %21 = sbr.rel (%p19) target = $region8
    $region5: #{tpu_custom_call.1} parent=1 // loop_body
      %s23 = ssub.s32 %s18, 1
      %s24 = ssub.s32 %s18, 2
      %s25 = sadd.s32 %s18, 1
      %s27 = sadd.s32 %s26, 1
      %p30 = scmp.eq.s32.totalorder %s18, 1
      %p31 = scmp.ne.s32.totalorder %s26, %s28
      %p32 = scmp.eq.s32.totalorder %s18, 0
      %p33 = por %p31, %p32
      %p34 = scmp.ne.s32.totalorder %s26, %s28
      %p35 = scmp.eq.s32.totalorder %s23, 1
      %p36 = por %p34, %p35
      %p37 = scmp.ne.s32.totalorder %s28, %s29
      %p38 = scmp.eq.s32.totalorder %s23, 0
      %p39 = por %p37, %p38
      %p40 = scmp.ne.s32.totalorder %s28, %s29
      %p41 = scmp.eq.s32.totalorder %s24, 1
      %p42 = por %p40, %p41
      %p44 = scmp.ne.s32.totalorder %s29, %s43
      %p45 = scmp.eq.s32.totalorder %s24, 0
      %p46 = por %p44, %p45
      %s48 = sadd.s32 %s47, 1
      %p51 = scmp.eq.s32.totalorder %s18, 1
      %p52 = scmp.ne.s32.totalorder %s47, %s49
      %p53 = scmp.eq.s32.totalorder %s18, 0
      %p54 = por %p52, %p53
      %p55 = scmp.ne.s32.totalorder %s47, %s49
      %p56 = scmp.eq.s32.totalorder %s23, 1
      %p57 = por %p55, %p56
      %p58 = scmp.ne.s32.totalorder %s49, %s50
      %p59 = scmp.eq.s32.totalorder %s23, 0
      %p60 = por %p58, %p59
      %p61 = scmp.ne.s32.totalorder %s49, %s50
      %p62 = scmp.eq.s32.totalorder %s24, 1
      %p63 = por %p61, %p62
      %p65 = scmp.ne.s32.totalorder %s50, %s64
      %p66 = scmp.eq.s32.totalorder %s24, 0
      %p67 = por %p65, %p66
      %s68 = ssub.s32 %s18, %s25
      %p69 = scmp.eq.s32.totalorder %s68, 0
      %s71 = sadd.s32 %s70, 1
      %s72 = scalar_select %p69, %s70, %s71
      %p75 = pneg %p69
      %p76 = scmp.eq.s32.totalorder %s18, 1
      %p77 = por %p75, %p76
      %p78 = scmp.ne.s32.totalorder %s70, %s73
      %p79 = scmp.eq.s32.totalorder %s18, 0
      %p80 = por %p78, %p79
      %p81 = scmp.ne.s32.totalorder %s70, %s73
      %p82 = scmp.eq.s32.totalorder %s23, 1
      %p83 = por %p81, %p82
      %p84 = scmp.ne.s32.totalorder %s73, %s74
      %p85 = scmp.eq.s32.totalorder %s23, 0
      %p86 = por %p84, %p85
      %p87 = scmp.ne.s32.totalorder %s73, %s74
      %p88 = scmp.eq.s32.totalorder %s24, 1
      %p89 = por %p87, %p88
      %p91 = scmp.ne.s32.totalorder %s74, %s90
      %p92 = scmp.eq.s32.totalorder %s24, 0
      %p93 = por %p91, %p92
      %p94 = scmp.le.s32.totalorder 1, %s18
      %p95 = scmp.lt.s32.totalorder %s18, 3
      %p96 = pnand %p94, %p95
      %p97 = pneg %p96
      // Predicated region
      $region9: #{tpu_custom_call.1} parent=5 // pred_check
        _
      $region10: #{tpu_custom_call.1} parent=5 // pred_check_branch
        %99 = sbr.rel (%p96) target = $region12
      $region11: #{tpu_custom_call.1} parent=5 // pred_region
        %s100 = ssub.s32 %s18, 1
        // Predicated region
        $region13: #{tpu_custom_call.1} parent=11 // pred_check
          %p101 = pneg %p39
        $region14: #{tpu_custom_call.1} parent=11 // pred_check_branch
          %103 = sbr.rel (%p101) target = $region16
        $region15: #{tpu_custom_call.1} parent=11 // pred_region
          %s105 = ssub.s32 8192, 8192
          %106 = vsyncadd [#allocation5], %s105
          %s107 = sshll.u32 [#allocation4], 4
          %s108 = int_to_ptr.vmem [resolvable:$true] %s107
          %113 = dma.hbm_to_vmem [thread:$0]  %s1, 8192, %s108, [#allocation5], 256, 256, 16
        $region16: #{tpu_custom_call.1} parent=11 // pred_fallthru
          _
        // Predicated region
        $region17: #{tpu_custom_call.1} parent=11 // pred_check
          %p114 = pneg %p60
        $region18: #{tpu_custom_call.1} parent=11 // pred_check_branch
          %116 = sbr.rel (%p114) target = $region20
        $region19: #{tpu_custom_call.1} parent=11 // pred_region
          %s118 = ssub.s32 256, 256
          %119 = vsyncadd [#allocation8], %s118
          %s121 = sshll.u32 [#allocation7], 4
          %s122 = int_to_ptr.vmem [resolvable:$true] %s121
          %124 = dma.hbm_to_vmem [thread:$0]  %s2, 256, %s122, [#allocation8]
        $region20: #{tpu_custom_call.1} parent=11 // pred_fallthru
          _
      $region12: #{tpu_custom_call.1} parent=5 // pred_fallthru
        _
      %p125 = scmp.lt.s32.totalorder %s18, 2
      // Predicated region
      $region21: #{tpu_custom_call.1} parent=5 // pred_check
        %p126 = pneg %p125
      $region22: #{tpu_custom_call.1} parent=5 // pred_check_branch
        %128 = sbr.rel (%p126) target = $region24
      $region23: #{tpu_custom_call.1} parent=5 // pred_region
        _
      $region24: #{tpu_custom_call.1} parent=5 // pred_fallthru
        _
      %p129 = scmp.le.s32.totalorder 1, %s18
      %p130 = scmp.lt.s32.totalorder %s18, 3
      %p131 = pnand %p129, %p130
      %p132 = pneg %p131
      // Predicated region
      $region25: #{tpu_custom_call.1} parent=5 // pred_check
        _
      $region26: #{tpu_custom_call.1} parent=5 // pred_check_branch
        %134 = sbr.rel (%p131) target = $region28
      $region27: #{tpu_custom_call.1} parent=5 // pred_region
        %s135 = ssub.s32 %s18, 1
        // Predicated region
        $region29: #{tpu_custom_call.1} parent=27 // pred_check
          %p136 = pneg %p39
        $region30: #{tpu_custom_call.1} parent=27 // pred_check_branch
          %138 = sbr.rel (%p136) target = $region32
        $region31: #{tpu_custom_call.1} parent=27 // pred_region
          %139 = dma.done [#allocation5], 8192
        $region32: #{tpu_custom_call.1} parent=27 // pred_fallthru
          _
        // Predicated region
        $region33: #{tpu_custom_call.1} parent=27 // pred_check
          %p140 = pneg %p60
        $region34: #{tpu_custom_call.1} parent=27 // pred_check_branch
          %142 = sbr.rel (%p140) target = $region36
        $region35: #{tpu_custom_call.1} parent=27 // pred_region
          %143 = dma.done [#allocation8], 256
        $region36: #{tpu_custom_call.1} parent=27 // pred_fallthru
          _
        %p144 = pneg %p39
        %p145 = pneg %p36
        %p146 = pneg %p60
        %p147 = pneg %p57
        %p148 = pneg %p86
        %p149 = pneg %p83
        %s150 = sand.u32 %s73, 1
        %s151 = scalar_lea.sflag [#allocation6], %s150
        %s152 = sand.u32 %s73, 1
        %s153 = smul.addr %s152, 16
        %s154 = scalar_lea.vmem [#allocation9], %s153
        %s155 = smul.u32 %s23, 8
        %s156 = sld [smem:[#allocation3 + %s155]]
        %s157 = sshra.s32 %s156, 3
        %s158 = sand.u32 %s156, 7
        %s159 = sshra.s32 %s156, 3
        %s160 = sand.u32 %s156, 7
        %s161 = smul.u32 %s157, 2
        %s162 = smul.u32 %s161, 8
        %s163 = sadd.s32 %s162, %s160
        %s164 = scalar_lea.vmem [#allocation4], %s163
        %v165 = vld [vmem:[%s164] ss:$8 sm:$0x3]
        %v166 = vld [vmem:[#allocation7] ss:$8 sm:$0x3]
        %v167 = vadd.f32 %v165, %v166
        %v168 = vlaneseq
        %vm169 = vcmp.ge.s32.totalorder %v168, 0
        %vm170 = vcmp.lt.s32.totalorder %v168, 256
        %vm171 = vmand %vm169, %vm170
        %172 = vst.msk [vmem:[%s154] ss:$8 sm:$0x3] %vm171, %v167
        %173 = vst.msk [vmem:[%s154] ss:$8 sm:$0x0] %vm171, %v167
        %s174 = sadd.s32 %s155, 1
        %s175 = sld [smem:[#allocation3 + %s174]]
        %s176 = sshra.s32 %s175, 3
        %s177 = sand.u32 %s175, 7
        %s178 = sshra.s32 %s175, 3
        %s179 = sand.u32 %s175, 7
        %s180 = smul.u32 %s176, 2
        %s181 = smul.u32 %s180, 8
        %s182 = sadd.s32 %s181, %s179
        %s183 = scalar_lea.vmem [#allocation4], %s182
        %v184 = vld [vmem:[%s183] ss:$8 sm:$0x3]
        %s185 = scalar_lea.vmem [#allocation7], 1
        %v186 = vld [vmem:[%s185] ss:$8 sm:$0x3]
        %v187 = vadd.f32 %v184, %v186
        %s188 = scalar_lea.vmem %s154, 1 [#allocation9]
        %189 = vst.msk [vmem:[%s188] ss:$8 sm:$0x3] %vm171, %v187
        %190 = vst.msk [vmem:[%s188] ss:$8 sm:$0x0] %vm171, %v187
        %s191 = sadd.s32 %s155, 2
        %s192 = sld [smem:[#allocation3 + %s191]]
        %s193 = sshra.s32 %s192, 3
        %s194 = sand.u32 %s192, 7
        %s195 = sshra.s32 %s192, 3
        %s196 = sand.u32 %s192, 7
        %s197 = smul.u32 %s193, 2
        %s198 = smul.u32 %s197, 8
        %s199 = sadd.s32 %s198, %s196
        %s200 = scalar_lea.vmem [#allocation4], %s199
        %v201 = vld [vmem:[%s200] ss:$8 sm:$0x3]
        %s202 = scalar_lea.vmem [#allocation7], 2
        %v203 = vld [vmem:[%s202] ss:$8 sm:$0x3]
        %v204 = vadd.f32 %v201, %v203
        %s205 = scalar_lea.vmem %s154, 2 [#allocation9]
        %206 = vst.msk [vmem:[%s205] ss:$8 sm:$0x3] %vm171, %v204
        %207 = vst.msk [vmem:[%s205] ss:$8 sm:$0x0] %vm171, %v204
        %s208 = sadd.s32 %s155, 3
        %s209 = sld [smem:[#allocation3 + %s208]]
        %s210 = sshra.s32 %s209, 3
        %s211 = sand.u32 %s209, 7
        %s212 = sshra.s32 %s209, 3
        %s213 = sand.u32 %s209, 7
        %s214 = smul.u32 %s210, 2
        %s215 = smul.u32 %s214, 8
        %s216 = sadd.s32 %s215, %s213
        %s217 = scalar_lea.vmem [#allocation4], %s216
        %v218 = vld [vmem:[%s217] ss:$8 sm:$0x3]
        %s219 = scalar_lea.vmem [#allocation7], 3
        %v220 = vld [vmem:[%s219] ss:$8 sm:$0x3]
        %v221 = vadd.f32 %v218, %v220
        %s222 = scalar_lea.vmem %s154, 3 [#allocation9]
        %223 = vst.msk [vmem:[%s222] ss:$8 sm:$0x3] %vm171, %v221
        %224 = vst.msk [vmem:[%s222] ss:$8 sm:$0x0] %vm171, %v221
        %s225 = sadd.s32 %s155, 4
        %s226 = sld [smem:[#allocation3 + %s225]]
        %s227 = sshra.s32 %s226, 3
        %s228 = sand.u32 %s226, 7
        %s229 = sshra.s32 %s226, 3
        %s230 = sand.u32 %s226, 7
        %s231 = smul.u32 %s227, 2
        %s232 = smul.u32 %s231, 8
        %s233 = sadd.s32 %s232, %s230
        %s234 = scalar_lea.vmem [#allocation4], %s233
        %v235 = vld [vmem:[%s234] ss:$8 sm:$0x3]
        %s236 = scalar_lea.vmem [#allocation7], 4
        %v237 = vld [vmem:[%s236] ss:$8 sm:$0x3]
        %v238 = vadd.f32 %v235, %v237
        %s239 = scalar_lea.vmem %s154, 4 [#allocation9]
        %240 = vst.msk [vmem:[%s239] ss:$8 sm:$0x3] %vm171, %v238
        %241 = vst.msk [vmem:[%s239] ss:$8 sm:$0x0] %vm171, %v238
        %s242 = sadd.s32 %s155, 5
        %s243 = sld [smem:[#allocation3 + %s242]]
        %s244 = sshra.s32 %s243, 3
        %s245 = sand.u32 %s243, 7
        %s246 = sshra.s32 %s243, 3
        %s247 = sand.u32 %s243, 7
        %s248 = smul.u32 %s244, 2
        %s249 = smul.u32 %s248, 8
        %s250 = sadd.s32 %s249, %s247
        %s251 = scalar_lea.vmem [#allocation4], %s250
        %v252 = vld [vmem:[%s251] ss:$8 sm:$0x3]
        %s253 = scalar_lea.vmem [#allocation7], 5
        %v254 = vld [vmem:[%s253] ss:$8 sm:$0x3]
        %v255 = vadd.f32 %v252, %v254
        %s256 = scalar_lea.vmem %s154, 5 [#allocation9]
        %257 = vst.msk [vmem:[%s256] ss:$8 sm:$0x3] %vm171, %v255
        %258 = vst.msk [vmem:[%s256] ss:$8 sm:$0x0] %vm171, %v255
        %s259 = sadd.s32 %s155, 6
        %s260 = sld [smem:[#allocation3 + %s259]]
        %s261 = sshra.s32 %s260, 3
        %s262 = sand.u32 %s260, 7
        %s263 = sshra.s32 %s260, 3
        %s264 = sand.u32 %s260, 7
        %s265 = smul.u32 %s261, 2
        %s266 = smul.u32 %s265, 8
        %s267 = sadd.s32 %s266, %s264
        %s268 = scalar_lea.vmem [#allocation4], %s267
        %v269 = vld [vmem:[%s268] ss:$8 sm:$0x3]
        %s270 = scalar_lea.vmem [#allocation7], 6
        %v271 = vld [vmem:[%s270] ss:$8 sm:$0x3]
        %v272 = vadd.f32 %v269, %v271
        %s273 = scalar_lea.vmem %s154, 6 [#allocation9]
        %274 = vst.msk [vmem:[%s273] ss:$8 sm:$0x3] %vm171, %v272
        %275 = vst.msk [vmem:[%s273] ss:$8 sm:$0x0] %vm171, %v272
        %s276 = sadd.s32 %s155, 7
        %s277 = sld [smem:[#allocation3 + %s276]]
        %s278 = sshra.s32 %s277, 3
        %s279 = sand.u32 %s277, 7
        %s280 = sshra.s32 %s277, 3
        %s281 = sand.u32 %s277, 7
        %s282 = smul.u32 %s278, 2
        %s283 = smul.u32 %s282, 8
        %s284 = sadd.s32 %s283, %s281
        %s285 = scalar_lea.vmem [#allocation4], %s284
        %v286 = vld [vmem:[%s285] ss:$8 sm:$0x3]
        %s287 = scalar_lea.vmem [#allocation7], 7
        %v288 = vld [vmem:[%s287] ss:$8 sm:$0x3]
        %v289 = vadd.f32 %v286, %v288
        %s290 = scalar_lea.vmem %s154, 7 [#allocation9]
        %291 = vst.msk [vmem:[%s290] ss:$8 sm:$0x3] %vm171, %v289
        %292 = vst.msk [vmem:[%s290] ss:$8 sm:$0x0] %vm171, %v289
        %s293 = sand.u32 %s73, 1
        %s294 = scalar_lea.sflag [#allocation6], %s293
        %s295 = sand.u32 %s73, 1
        %s296 = smul.addr %s295, 16
        %s297 = scalar_lea.vmem [#allocation9], %s296
        // Predicated region
        $region37: #{tpu_custom_call.1} parent=27 // pred_check
          %p298 = pneg %p83
        $region38: #{tpu_custom_call.1} parent=27 // pred_check_branch
          %300 = sbr.rel (%p298) target = $region40
        $region39: #{tpu_custom_call.1} parent=27 // pred_region
          %s302 = ssub.s32 256, 256
          %303 = vsyncadd %s294, %s302
          %s304 = smul.addr %s23, 2
          %s305 = smul.addr %s304, 128
          %s306 = scalar_lea.hbm %s3, %s305
          %s308 = sshll.u32 %s297, 4
          %s309 = int_to_ptr.vmem [resolvable:$true] %s308
          %311 = dma.vmem_to_hbm [thread:$0]  %s309, 256, %s306, %s294
        $region40: #{tpu_custom_call.1} parent=27 // pred_fallthru
          _
      $region28: #{tpu_custom_call.1} parent=5 // pred_fallthru
        _
      %p312 = scmp.le.s32.totalorder 2, %s18
      // Predicated region
      $region41: #{tpu_custom_call.1} parent=5 // pred_check
        %p313 = pneg %p312
      $region42: #{tpu_custom_call.1} parent=5 // pred_check_branch
        %315 = sbr.rel (%p313) target = $region44
      $region43: #{tpu_custom_call.1} parent=5 // pred_region
        %s316 = ssub.s32 %s18, 2
        // Predicated region
        $region45: #{tpu_custom_call.1} parent=43 // pred_check
          %p317 = pneg %p89
        $region46: #{tpu_custom_call.1} parent=43 // pred_check_branch
          %319 = sbr.rel (%p317) target = $region48
        $region47: #{tpu_custom_call.1} parent=43 // pred_region
          %s320 = sand.u32 %s74, 1
          %s321 = scalar_lea.sflag [#allocation6], %s320
          %s322 = sand.u32 %s74, 1
          %s323 = smul.addr %s322, 16
          %s324 = scalar_lea.vmem [#allocation9], %s323
          %325 = dma.done %s321, 256
        $region48: #{tpu_custom_call.1} parent=43 // pred_fallthru
          _
      $region44: #{tpu_custom_call.1} parent=5 // pred_fallthru
        _
    $region6: #{tpu_custom_call.1} parent=1 // loop_footer
      %s22 = sadd.s32 1, %s18
    $region7: #{tpu_custom_call.1} parent=1 // loop_footer_branch
      %17 = sbr.rel target = $region3
    $region8: #{tpu_custom_call.1} parent=1 // loop_exit
      _
    %326 = vsyncpa [#allocation5], 1
    %s327 = scalar_lea.sflag [#allocation5], 1
    %328 = vsyncpa %s327, 1
    %329 = vsyncpa [#allocation8], 1
    %330 = vsyncpa [#allocation6], 1
    %s331 = scalar_lea.sflag [#allocation6], 1
    %332 = vsyncpa %s331, 1

</llo_original>
